<compile_context>
chip_gen: v6e
topology: v6e:2x2x1
jax: 0.10.0
libtpu: 0.0.40
codegen_flags: <defaults>
</compile_context>

<pallas_src>
import functools

import jax
import jax.numpy as jnp
from jax.experimental import pallas as pl
from jax.experimental.pallas import tpu as pltpu


HPAD = 128      # padded hidden width (n_units=100 -> 128); column HPAD-1 is
                # the constant-one hidden unit that carries each layer-2 bias.
TAIL_PAD = 16   # padded width of the per-step x slab: [x | 1 | obs | 0 ...]


# ----------------------------- Pallas kernel --------------------------------
def gru_seq_kernel(y0_ref, x_ref, w1y_ref, w1t_ref, w2ur_ref, w1ny_ref,
                   w2n_ref, out_ref, state_ref, *, latent_dim, obs_col):
    f32 = jnp.float32
    L = latent_dim
    L2 = 2 * L
    t = pl.program_id(0)

    # Recurrent state [y_mean | y_std] lives in VMEM scratch across the grid.
    @pl.when(t == 0)
    def _():
        state_ref[...] = y0_ref[...]

    y_cat = state_ref[...]                       # (B, 2L)       f32
    xt = x_ref[0]                                # (B, TAIL_PAD) f32: [x|1|obs|0]

    w1t = w1t_ref[...]
    wdt = w1t.dtype                              # matmul-input dtype (bf16/f32)
    yb = y_cat.astype(wdt)
    xb = xt.astype(wdt)

    # ---- fused first layers -------------------------------------------------
    # tail rows [x | 1] feed update, reset AND new-state nets in one matmul;
    # y rows feed update / reset here and the new-state net below (r-scaled).
    pre_t = jnp.dot(xb, w1t, preferred_element_type=f32)            # (B, 3*HPAD)
    pre_y = jnp.dot(yb, w1y_ref[...], preferred_element_type=f32)   # (B, 2*HPAD)

    h_ur = jnp.maximum(pre_t[:, :2 * HPAD] + pre_y, 0.0)
    gates = jax.nn.sigmoid(
        jnp.dot(h_ur.astype(wdt), w2ur_ref[...],
                preferred_element_type=f32))                        # (B, 4L)
    u_cat = gates[:, :L2]          # update gate, pre-broadcast over [ym | ys]
    r_cat = gates[:, L2:]          # reset gate,  pre-broadcast over [ym | ys]

    # ---- new-state net: r-scaled y half + (already computed) x-tail half ----
    h_n = jnp.maximum(
        pre_t[:, 2 * HPAD:]
        + jnp.dot((y_cat * r_cat).astype(wdt), w1ny_ref[...],
                  preferred_element_type=f32), 0.0)
    ns = jnp.dot(h_n.astype(wdt), w2n_ref[...],
                 preferred_element_type=f32)                        # (B, 2L)
    col = jax.lax.broadcasted_iota(jnp.int32, ns.shape, 1)
    ns = jnp.where(col >= L, jnp.abs(ns), ns)        # abs() on the std half

    # ---- GRU blend + masked update (rows with no observation keep state) ----
    out = (1.0 - u_cat) * ns + u_cat * y_cat
    obs = xt[:, obs_col:obs_col + 1]                 # (B, 1), values in {0, 1}
    new_state = obs * out + (1.0 - obs) * y_cat

    state_ref[...] = new_state
    out_ref[0] = new_state


# --------------------------- parameter packing -------------------------------
def pack_gru_params(params, latent_dim, input_dim, n_units,
                    dtype=jnp.bfloat16):
    """Pack (in, out)-layout weights / (1, out) biases into 5 fused,
    tile-aligned blocks.  Done once at init time, not per call."""
    L = latent_dim
    L2 = 2 * L
    Dh = input_dim // 2
    H = n_units
    assert H <= HPAD - 1 and Dh + 2 <= TAIL_PAD

    def z(shape):
        return jnp.zeros(shape, jnp.float32)

    # y-rows of the fused [update | reset] first layer: (2L, 2*HPAD).
    w1y = z((L2, 2 * HPAD))
    w1y = w1y.at[:, 0:H].set(params["u_w1"][:L2])
    w1y = w1y.at[:, HPAD:HPAD + H].set(params["r_w1"][:L2])

    # tail rows [x | 1(bias) | obs | pad] of the [update | reset | new-state]
    # first layers: (TAIL_PAD, 3*HPAD).  obs / pad rows stay all-zero.
    w1t = z((TAIL_PAD, 3 * HPAD))
    w1t = w1t.at[:Dh, 0:H].set(params["u_w1"][L2:])
    w1t = w1t.at[:Dh, HPAD:HPAD + H].set(params["r_w1"][L2:])
    w1t = w1t.at[:Dh, 2 * HPAD:2 * HPAD + H].set(params["n_w1"][L2:])
    w1t = w1t.at[Dh, 0:H].set(params["u_b1"].reshape(-1))
    w1t = w1t.at[Dh, HPAD:HPAD + H].set(params["r_b1"].reshape(-1))
    w1t = w1t.at[Dh, 2 * HPAD:2 * HPAD + H].set(params["n_b1"].reshape(-1))
    # constant-one hidden units (ReLU(1) == 1) that carry the layer-2 biases.
    for c in (HPAD - 1, 2 * HPAD - 1, 3 * HPAD - 1):
        w1t = w1t.at[Dh, c].set(1.0)

    # fused [update | reset] second layer: (2*HPAD, 4L) -> [u | u | r | r].
    w2ur = z((2 * HPAD, 4 * L))
    for c in (0, L):                                    # two copies of u
        w2ur = w2ur.at[0:H, c:c + L].set(params["u_w2"])
        w2ur = w2ur.at[HPAD - 1, c:c + L].set(params["u_b2"].reshape(-1))
    for c in (2 * L, 3 * L):                            # two copies of r
        w2ur = w2ur.at[HPAD:HPAD + H, c:c + L].set(params["r_w2"])
        w2ur = w2ur.at[2 * HPAD - 1, c:c + L].set(params["r_b2"].reshape(-1))

    # new-state first layer, y rows only (multiplied by the reset gate
    # in-kernel): (2L, HPAD); column HPAD-1 stays zero (keeps the const unit).
    w1ny = z((L2, HPAD))
    w1ny = w1ny.at[:, 0:H].set(params["n_w1"][:L2])

    # new-state second layer: (HPAD, 2L), bias in row HPAD-1.
    w2n = z((HPAD, L2))
    w2n = w2n.at[0:H, :].set(params["n_w2"])
    w2n = w2n.at[HPAD - 1, :].set(params["n_b2"].reshape(-1))

    cast = lambda a: a.astype(dtype)
    return dict(w1y=cast(w1y), w1t=cast(w1t), w2ur=cast(w2ur),
                w1ny=cast(w1ny), w2n=cast(w2n))


# ------------------------------- wrappers -------------------------------------
def _pack_x_slab(x_seq, Dh):
    """(T, B, input_dim) [data | mask] -> (T, B, TAIL_PAD) [data | 1 | obs | 0].
    The obs column folds the per-row any(mask)>0 flag into the activation slab
    so the kernel needs no mask operand and no cross-lane reduction."""
    T, B, _ = x_seq.shape
    xd = x_seq[..., :Dh]
    mask = x_seq[..., Dh:]
    obs = (jnp.sum(mask, axis=-1, keepdims=True) > 0.0).astype(jnp.float32)
    ones = jnp.ones((T, B, 1), jnp.float32)
    pad = jnp.zeros((T, B, TAIL_PAD - Dh - 2), jnp.float32)
    return jnp.concatenate([xd, ones, obs, pad], axis=-1)


def gru_unit_sequence(y_mean0, y_std0, x_seq, packed, latent_dim):
    """Run T GRU_unit steps in one weight-stationary pallas_call.

    x_seq: (T, B, input_dim) with [data | mask] halves per step.
    Returns (new_y_mean, new_y_std), each (T, B, latent_dim)."""
    T, B, input_dim = x_seq.shape
    Dh = input_dim // 2
    L = latent_dim
    L2 = 2 * L
    y0 = jnp.concatenate([y_mean0, y_std0], axis=-1).astype(jnp.float32)
    xs = _pack_x_slab(x_seq, Dh)

    def const2d(arr):   # constant index_map -> block stays resident in VMEM
        return pl.BlockSpec(arr.shape, lambda t: (0, 0))

    grid_spec = pltpu.PrefetchScalarGridSpec(
        num_scalar_prefetch=0,
        grid=(T,),
        in_specs=[
            const2d(y0),                                          # initial state
            pl.BlockSpec((1, B, TAIL_PAD), lambda t: (t, 0, 0)),  # x slab / step
            const2d(packed["w1y"]),                               # weights stay
            const2d(packed["w1t"]),                               # VMEM-resident
            const2d(packed["w2ur"]),                              # across the
            const2d(packed["w1ny"]),                              # whole grid
            const2d(packed["w2n"]),
        ],
        out_specs=pl.BlockSpec((1, B, L2), lambda t: (t, 0, 0)),
        scratch_shapes=[pltpu.VMEM((B, L2), jnp.float32)],        # carried state
    )
    out = pl.pallas_call(
        functools.partial(gru_seq_kernel, latent_dim=L, obs_col=Dh + 1),
        out_shape=jax.ShapeDtypeStruct((T, B, L2), jnp.float32),
        grid_spec=grid_spec,
        compiler_params=pltpu.CompilerParams(
            dimension_semantics=("arbitrary",)),    # sequential recurrence
    )(y0, xs, packed["w1y"], packed["w1t"], packed["w2ur"],
      packed["w1ny"], packed["w2n"])
    return out[..., :L], out[..., L:]


def gru_unit_forward(y_mean, y_std, x, packed, latent_dim):
    """Single-step forward matching GRU_unit.forward (masked_update=True):
    the T == 1 case of the weight-stationary sequence kernel."""
    ym, ys = gru_unit_sequence(y_mean, y_std, x[None], packed, latent_dim)
    return ym[0], ys[0]


# --------------------------- pure-JAX reference -------------------------------
def gru_unit_reference(y_mean, y_std, x, params, latent_dim):
    Dh = x.shape[-1] // 2
    xd, mask = x[:, :Dh], x[:, Dh:]
    yc = jnp.concatenate([y_mean, y_std, xd], -1)

    def mlp(yc_, w1, b1, w2, b2):
        h = jnp.maximum(yc_ @ w1 + b1, 0.0)
        return h @ w2 + b2

    u = jax.nn.sigmoid(mlp(yc, params["u_w1"], params["u_b1"],
                           params["u_w2"], params["u_b2"]))
    r = jax.nn.sigmoid(mlp(yc, params["r_w1"], params["r_b1"],
                           params["r_w2"], params["r_b2"]))
    cc = jnp.concatenate([y_mean * r, y_std * r, xd], -1)
    ns_full = mlp(cc, params["n_w1"], params["n_b1"],
                  params["n_w2"], params["n_b2"])
    ns, ns_std = ns_full[:, :latent_dim], jnp.abs(ns_full[:, latent_dim:])
    new_y = (1 - u) * ns + u * y_mean
    new_y_std = (1 - u) * ns_std + u * y_std
    m = (jnp.sum(mask, -1, keepdims=True) > 0).astype(jnp.float32)
    return m * new_y + (1 - m) * y_mean, m * new_y_std + (1 - m) * y_std


def gru_unit_reference_sequence(y_mean0, y_std0, x_seq, params, latent_dim):
    ym, ys = y_mean0, y_std0
    ms, ss = [], []
    for t in range(x_seq.shape[0]):
        ym, ys = gru_unit_reference(ym, ys, x_seq[t], params, latent_dim)
        ms.append(ym)
        ss.append(ys)
    return jnp.stack(ms), jnp.stack(ss)


# --------------------------------- main ---------------------------------------
if __name__ == "__main__":
    B = 8            # batch rows
    T = 4            # time steps for the weight-stationary sequence path
    latent_dim = 32  # L
    input_dim = 16   # D (split into data / mask halves of 8 each)
    n_units = 100    # hidden units (module default)
    in_feat = latent_dim * 2 + input_dim // 2

    key = jax.random.PRNGKey(0)
    ks = jax.random.split(key, 16)

    def lin(kw, kb, fin, fout, scale=0.1):
        w = scale * jax.random.normal(kw, (fin, fout), jnp.float32)
        b = scale * jax.random.normal(kb, (1, fout), jnp.float32)
        return w, b

    u_w1, u_b1 = lin(ks[0], ks[1], in_feat, n_units)
    u_w2, u_b2 = lin(ks[2], ks[3], n_units, latent_dim)
    r_w1, r_b1 = lin(ks[4], ks[5], in_feat, n_units)
    r_w2, r_b2 = lin(ks[6], ks[7], n_units, latent_dim)
    n_w1, n_b1 = lin(ks[8], ks[9], in_feat, n_units)
    n_w2, n_b2 = lin(ks[10], ks[11], n_units, 2 * latent_dim)
    params = dict(u_w1=u_w1, u_b1=u_b1, u_w2=u_w2, u_b2=u_b2,
                  r_w1=r_w1, r_b1=r_b1, r_w2=r_w2, r_b2=r_b2,
                  n_w1=n_w1, n_b1=n_b1, n_w2=n_w2, n_b2=n_b2)

    # one-time parameter packing (outside the hot path)
    packed_f32 = jax.tree_util.tree_map(
        jax.block_until_ready,
        pack_gru_params(params, latent_dim, input_dim, n_units,
                        dtype=jnp.float32))
    packed_bf16 = jax.tree_util.tree_map(
        jax.block_until_ready,
        pack_gru_params(params, latent_dim, input_dim, n_units,
                        dtype=jnp.bfloat16))

    y_mean = jax.random.normal(ks[12], (B, latent_dim), jnp.float32)
    y_std = jnp.abs(jax.random.normal(ks[13], (B, latent_dim), jnp.float32))
    mask = (jax.random.uniform(ks[14], (T, B, input_dim // 2)) > 0.5
            ).astype(jnp.float32)
    # make some (step, row) slots fully unobserved to exercise state carrying
    mask = mask.at[0, 1].set(0.0)
    mask = mask.at[2, 3].set(0.0)
    x_raw = jax.random.normal(ks[15], (T, B, input_dim // 2), jnp.float32)
    x_seq = jnp.concatenate([x_raw * mask, mask], -1)  # data zero where mask==0

    # --- single step (== module forward), f32 weights: tight check -----------
    x0 = x_seq[0]
    new_y, new_y_std = gru_unit_forward(y_mean, y_std, x0, packed_f32,
                                        latent_dim)
    jax.block_until_ready((new_y, new_y_std))
    ref_y, ref_y_std = gru_unit_reference(y_mean, y_std, x0, params, latent_dim)
    assert jnp.allclose(new_y, ref_y, atol=1e-4, rtol=1e-4)
    assert jnp.allclose(new_y_std, ref_y_std, atol=1e-4, rtol=1e-4)
    assert bool((new_y_std >= 0).all())

    # --- single step, bf16 weights / native-bf16 MXU path --------------------
    nyb, nysb = gru_unit_forward(y_mean, y_std, x0, packed_bf16, latent_dim)
    jax.block_until_ready((nyb, nysb))
    assert jnp.allclose(nyb, ref_y, atol=5e-2, rtol=5e-2)
    assert jnp.allclose(nysb, ref_y_std, atol=5e-2, rtol=5e-2)
    assert bool((nysb >= 0).all())

    # --- T-step weight-stationary sequence (one pallas_call, grid over T) ----
    ref_m, ref_s = gru_unit_reference_sequence(y_mean, y_std, x_seq, params,
                                               latent_dim)
    seq_m, seq_s = gru_unit_sequence(y_mean, y_std, x_seq, packed_f32,
                                     latent_dim)
    jax.block_until_ready((seq_m, seq_s))
    assert jnp.allclose(seq_m, ref_m, atol=1e-3, rtol=1e-3)
    assert jnp.allclose(seq_s, ref_s, atol=1e-3, rtol=1e-3)
    assert bool((seq_s >= 0).all())

    seq_mb, seq_sb = gru_unit_sequence(y_mean, y_std, x_seq, packed_bf16,
                                       latent_dim)
    jax.block_until_ready((seq_mb, seq_sb))
    assert jnp.allclose(seq_mb, ref_m, atol=1e-1, rtol=1e-1)
    assert jnp.allclose(seq_sb, ref_s, atol=1e-1, rtol=1e-1)

    print("KERNEL_OK")
</pallas_src>

<mosaic_0001>
module attributes {stable_mosaic.version = 11 : i64} {
  func.func @gru_seq_kernel(%arg0: i32, %arg1: memref<8x64xf32, #tpu.memory_space<vmem>>, %arg2: memref<1x8x16xf32, #tpu.memory_space<vmem>>, %arg3: memref<64x256xf32, #tpu.memory_space<vmem>>, %arg4: memref<16x384xf32, #tpu.memory_space<vmem>>, %arg5: memref<256x128xf32, #tpu.memory_space<vmem>>, %arg6: memref<64x128xf32, #tpu.memory_space<vmem>>, %arg7: memref<128x64xf32, #tpu.memory_space<vmem>>, %arg8: memref<1x8x64xf32, #tpu.memory_space<vmem>>, %arg9: memref<8x64xf32, #tpu.memory_space<vmem>>) attributes {dimension_semantics = [#tpu.dimension_semantics<arbitrary>], iteration_bounds = array<i64: 1>, scalar_prefetch = 0 : i64, scratch_operands = 1 : i64, tpu.core_type = #tpu.core_type<tc>, window_params = [{pipeline_mode = #tpu.pipeline_mode<synchronous>, transform_indices = @transform_0, window_bounds = array<i64: 8, 64>}, {transform_indices = @transform_1, window_bounds = array<i64: 1, 8, 16>}, {pipeline_mode = #tpu.pipeline_mode<synchronous>, transform_indices = @transform_2, window_bounds = array<i64: 64, 256>}, {pipeline_mode = #tpu.pipeline_mode<synchronous>, transform_indices = @transform_3, window_bounds = array<i64: 16, 384>}, {pipeline_mode = #tpu.pipeline_mode<synchronous>, transform_indices = @transform_4, window_bounds = array<i64: 256, 128>}, {pipeline_mode = #tpu.pipeline_mode<synchronous>, transform_indices = @transform_5, window_bounds = array<i64: 64, 128>}, {pipeline_mode = #tpu.pipeline_mode<synchronous>, transform_indices = @transform_6, window_bounds = array<i64: 128, 64>}, {transform_indices = @transform_7, window_bounds = array<i64: 1, 8, 64>}]} {
    %c0_i32 = arith.constant 0 : i32
    %0 = arith.cmpi eq, %arg0, %c0_i32 : i32
    %1 = arith.extui %0 : i1 to i32
    %c0_i32_0 = arith.constant 0 : i32
    %2 = arith.cmpi ne, %1, %c0_i32_0 : i32
    scf.if %2 {
      %c0_29 = arith.constant 0 : index
      %c0_30 = arith.constant 0 : index
      %54 = vector.load %arg1[%c0_29, %c0_30] : memref<8x64xf32, #tpu.memory_space<vmem>>, vector<8x64xf32>
      %c0_31 = arith.constant 0 : index
      %c0_32 = arith.constant 0 : index
      %55 = vector.load %arg9[%c0_31, %c0_32] : memref<8x64xf32, #tpu.memory_space<vmem>>, vector<8x64xf32>
      tpu.vector_store %arg9[%c0_31, %c0_32], %54 {strides = array<i32>} : memref<8x64xf32, #tpu.memory_space<vmem>>, vector<8x64xf32>,
    } else {
    }
    %c0 = arith.constant 0 : index
    %c0_1 = arith.constant 0 : index
    %3 = vector.load %arg9[%c0, %c0_1] : memref<8x64xf32, #tpu.memory_space<vmem>>, vector<8x64xf32>
    %c0_2 = arith.constant 0 : index
    %c0_3 = arith.constant 0 : index
    %c0_4 = arith.constant 0 : index
    %4 = vector.load %arg2[%c0_2, %c0_3, %c0_4] : memref<1x8x16xf32, #tpu.memory_space<vmem>>, vector<1x8x16xf32>
    %5 = vector.shape_cast %4 : vector<1x8x16xf32> to vector<8x16xf32>
    %c0_5 = arith.constant 0 : index
    %c0_6 = arith.constant 0 : index
    %6 = vector.load %arg4[%c0_5, %c0_6] : memref<16x384xf32, #tpu.memory_space<vmem>>, vector<16x384xf32>
    %cst = arith.constant dense<0.000000e+00> : vector<8x384xf32>
    %7 = tpu.matmul %5, %6, %cst {dimension_numbers = #tpu.dot_dimension_numbers<[1], [0], [0], [1], [0, 0, 1, 1], [], []>} : vector<8x16xf32>, vector<16x384xf32>, vector<8x384xf32> -> vector<8x384xf32>
    %c0_7 = arith.constant 0 : index
    %c0_8 = arith.constant 0 : index
    %8 = vector.load %arg3[%c0_7, %c0_8] : memref<64x256xf32, #tpu.memory_space<vmem>>, vector<64x256xf32>
    %cst_9 = arith.constant dense<0.000000e+00> : vector<8x256xf32>
    %9 = tpu.matmul %3, %8, %cst_9 {dimension_numbers = #tpu.dot_dimension_numbers<[1], [0], [0], [1], [0, 0, 1, 1], [], []>} : vector<8x64xf32>, vector<64x256xf32>, vector<8x256xf32> -> vector<8x256xf32>
    %10 = vector.extract_strided_slice %7 {offsets = [0, 0], sizes = [8, 256], strides = [1, 1]} : vector<8x384xf32> to vector<8x256xf32>
    %11 = arith.addf %10, %9 : vector<8x256xf32>
    %cst_10 = arith.constant 0.000000e+00 : f32
    %12 = vector.broadcast %cst_10 : f32 to vector<8x256xf32>
    %13 = arith.maximumf %11, %12 : vector<8x256xf32>
    %c0_11 = arith.constant 0 : index
    %c0_12 = arith.constant 0 : index
    %14 = vector.load %arg5[%c0_11, %c0_12] : memref<256x128xf32, #tpu.memory_space<vmem>>, vector<256x128xf32>
    %cst_13 = arith.constant dense<0.000000e+00> : vector<8x128xf32>
    %15 = tpu.matmul %13, %14, %cst_13 {dimension_numbers = #tpu.dot_dimension_numbers<[1], [0], [0], [1], [0, 0, 1, 1], [], []>} : vector<8x256xf32>, vector<256x128xf32>, vector<8x128xf32> -> vector<8x128xf32>
    %16 = arith.negf %15 : vector<8x128xf32>
    %17 = math.exp %16 : vector<8x128xf32>
    %cst_14 = arith.constant 1.000000e+00 : f32
    %18 = vector.broadcast %cst_14 : f32 to vector<8x128xf32>
    %19 = arith.addf %18, %17 : vector<8x128xf32>
    %20 = arith.divf %18, %19 : vector<8x128xf32>
    %21 = vector.extract_strided_slice %20 {offsets = [0, 0], sizes = [8, 64], strides = [1, 1]} : vector<8x128xf32> to vector<8x64xf32>
    %22 = vector.extract_strided_slice %20 {offsets = [0, 64], sizes = [8, 64], strides = [1, 1]} : vector<8x128xf32> to vector<8x64xf32>
    %23 = vector.extract_strided_slice %7 {offsets = [0, 256], sizes = [8, 128], strides = [1, 1]} : vector<8x384xf32> to vector<8x128xf32>
    %24 = arith.mulf %3, %22 : vector<8x64xf32>
    %c0_15 = arith.constant 0 : index
    %c0_16 = arith.constant 0 : index
    %25 = vector.load %arg6[%c0_15, %c0_16] : memref<64x128xf32, #tpu.memory_space<vmem>>, vector<64x128xf32>
    %cst_17 = arith.constant dense<0.000000e+00> : vector<8x128xf32>
    %26 = tpu.matmul %24, %25, %cst_17 {dimension_numbers = #tpu.dot_dimension_numbers<[1], [0], [0], [1], [0, 0, 1, 1], [], []>} : vector<8x64xf32>, vector<64x128xf32>, vector<8x128xf32> -> vector<8x128xf32>
    %27 = arith.addf %23, %26 : vector<8x128xf32>
    %cst_18 = arith.constant 0.000000e+00 : f32
    %28 = vector.broadcast %cst_18 : f32 to vector<8x128xf32>
    %29 = arith.maximumf %27, %28 : vector<8x128xf32>
    %c0_19 = arith.constant 0 : index
    %c0_20 = arith.constant 0 : index
    %30 = vector.load %arg7[%c0_19, %c0_20] : memref<128x64xf32, #tpu.memory_space<vmem>>, vector<128x64xf32>
    %cst_21 = arith.constant dense<0.000000e+00> : vector<8x64xf32>
    %31 = tpu.matmul %29, %30, %cst_21 {dimension_numbers = #tpu.dot_dimension_numbers<[1], [0], [0], [1], [0, 0, 1, 1], [], []>} : vector<8x128xf32>, vector<128x64xf32>, vector<8x64xf32> -> vector<8x64xf32>
    %32 = tpu.iota {dimensions = array<i32: 1>} : vector<8x64xi32>
    %c32_i32 = arith.constant 32 : i32
    %33 = vector.broadcast %c32_i32 : i32 to vector<8x64xi32>
    %34 = arith.cmpi sge, %32, %33 : vector<8x64xi32>
    %35 = math.absf %31 : vector<8x64xf32>
    %36 = arith.select %34, %35, %31 : vector<8x64xi1>, vector<8x64xf32>
    %cst_22 = arith.constant 1.000000e+00 : f32
    %37 = vector.broadcast %cst_22 : f32 to vector<8x64xf32>
    %38 = arith.subf %37, %21 : vector<8x64xf32>
    %39 = arith.mulf %38, %36 : vector<8x64xf32>
    %40 = arith.mulf %21, %3 : vector<8x64xf32>
    %41 = arith.addf %39, %40 : vector<8x64xf32>
    %42 = vector.extract_strided_slice %5 {offsets = [0, 9], sizes = [8, 1], strides = [1, 1]} : vector<8x16xf32> to vector<8x1xf32>
    %43 = vector.broadcast %42 : vector<8x1xf32> to vector<8x64xf32>
    %44 = arith.mulf %43, %41 : vector<8x64xf32>
    %cst_23 = arith.constant 1.000000e+00 : f32
    %45 = vector.broadcast %cst_23 : f32 to vector<8x1xf32>
    %46 = arith.subf %45, %42 : vector<8x1xf32>
    %47 = vector.broadcast %46 : vector<8x1xf32> to vector<8x64xf32>
    %48 = arith.mulf %47, %3 : vector<8x64xf32>
    %49 = arith.addf %44, %48 : vector<8x64xf32>
    %c0_24 = arith.constant 0 : index
    %c0_25 = arith.constant 0 : index
    %50 = vector.load %arg9[%c0_24, %c0_25] : memref<8x64xf32, #tpu.memory_space<vmem>>, vector<8x64xf32>
    tpu.vector_store %arg9[%c0_24, %c0_25], %49 {strides = array<i32>} : memref<8x64xf32, #tpu.memory_space<vmem>>, vector<8x64xf32>,
    %c0_26 = arith.constant 0 : index
    %c0_27 = arith.constant 0 : index
    %c0_28 = arith.constant 0 : index
    %51 = vector.load %arg8[%c0_26, %c0_27, %c0_28] : memref<1x8x64xf32, #tpu.memory_space<vmem>>, vector<1x8x64xf32>
    %52 = vector.shape_cast %51 : vector<1x8x64xf32> to vector<8x64xf32>
    %53 = vector.shape_cast %49 : vector<8x64xf32> to vector<1x8x64xf32>
    tpu.vector_store %arg8[%c0_26, %c0_27, %c0_28], %53 {strides = array<i32>} : memref<1x8x64xf32, #tpu.memory_space<vmem>>, vector<1x8x64xf32>,
    return
  }
  func.func @transform_0(%arg0: i32) -> (i32, i32) {
    %c0_i32 = arith.constant 0 : i32
    %c0_i32_0 = arith.constant 0 : i32
    %c0_i32_1 = arith.constant 0 : i32
    return %c0_i32, %c0_i32_0 : i32, i32
  }
  func.func @transform_1(%arg0: i32) -> (i32, i32, i32) {
    %c0_i32 = arith.constant 0 : i32
    %c0_i32_0 = arith.constant 0 : i32
    %c0_i32_1 = arith.constant 0 : i32
    return %arg0, %c0_i32, %c0_i32_0 : i32, i32, i32
  }
  func.func @transform_2(%arg0: i32) -> (i32, i32) {
    %c0_i32 = arith.constant 0 : i32
    %c0_i32_0 = arith.constant 0 : i32
    %c0_i32_1 = arith.constant 0 : i32
    return %c0_i32, %c0_i32_0 : i32, i32
  }
  func.func @transform_3(%arg0: i32) -> (i32, i32) {
    %c0_i32 = arith.constant 0 : i32
    %c0_i32_0 = arith.constant 0 : i32
    %c0_i32_1 = arith.constant 0 : i32
    return %c0_i32, %c0_i32_0 : i32, i32
  }
  func.func @transform_4(%arg0: i32) -> (i32, i32) {
    %c0_i32 = arith.constant 0 : i32
    %c0_i32_0 = arith.constant 0 : i32
    %c0_i32_1 = arith.constant 0 : i32
    return %c0_i32, %c0_i32_0 : i32, i32
  }
  func.func @transform_5(%arg0: i32) -> (i32, i32) {
    %c0_i32 = arith.constant 0 : i32
    %c0_i32_0 = arith.constant 0 : i32
    %c0_i32_1 = arith.constant 0 : i32
    return %c0_i32, %c0_i32_0 : i32, i32
  }
  func.func @transform_6(%arg0: i32) -> (i32, i32) {
    %c0_i32 = arith.constant 0 : i32
    %c0_i32_0 = arith.constant 0 : i32
    %c0_i32_1 = arith.constant 0 : i32
    return %c0_i32, %c0_i32_0 : i32, i32
  }
  func.func @transform_7(%arg0: i32) -> (i32, i32, i32) {
    %c0_i32 = arith.constant 0 : i32
    %c0_i32_0 = arith.constant 0 : i32
    %c0_i32_1 = arith.constant 0 : i32
    return %arg0, %c0_i32, %c0_i32_0 : i32, i32, i32
  }
}

</mosaic_0001>

<llo_original>
// kernel: tpu_custom_call.1
$region0: #{tpu_custom_call.1}
  #allocation0 [shape = 'u32[]', space=smem, size = 0x4, offset = 0x4, fixed_abs, tag = 'smem constant byte address 0x4 - core index']
  #allocation1 [shape = 'u32[144,128]{1,0:T(1,128)}', space=vmem, size = 0x12000, scoped, tag = 'internal scratch']
  #allocation2 [shape = 'f32[8,64]{1,0:T(8,128)}', space=vmem, size = 0x1000, scoped, tag = 'scratch operand']
  %s0 = inlined_call_operand.hbm [shape: f32[8,64], index: 0, kind: input, shape index: {}]
  %s1 = inlined_call_operand.hbm [shape: f32[1,8,16], index: 1, kind: input, shape index: {}]
  %s2 = inlined_call_operand.vmem [shape: f32[64,256], index: 2, kind: input, shape index: {}]
  %s3 = inlined_call_operand.hbm [shape: f32[16,384], index: 3, kind: input, shape index: {}]
  %s4 = inlined_call_operand.hbm [shape: f32[256,128], index: 4, kind: input, shape index: {}]
  %s5 = inlined_call_operand.vmem [shape: f32[64,128], index: 5, kind: input, shape index: {}]
  %s6 = inlined_call_operand.vmem [shape: f32[128,64], index: 6, kind: input, shape index: {}]
  %s7 = inlined_call_operand.hbm [shape: f32[1,8,64], index: 7, kind: output, shape index: {}]
  %s8 = sld [smem:[#allocation0]]
  $region58: #{tpu_custom_call.1} parent=0
    _
  %s10 = ssub.s32 1, %s8
  %s11 = scalar_select 0, %s10, %s8
  $region1: #{tpu_custom_call.1} parent=0
    #allocation3 [shape = 'u8[4096]{0}', space=vmem, size = 0x1000, scoped, tag = 'input window, operand 0, single buffered']
    #allocation4 [shape = 's32[1]{0}', space=sflag, size = 0x4, scoped, tag = 'scoped memory for tpu_custom_call.1']
    #allocation5 [shape = 's32[1]{0}', space=sflag, size = 0x4, scoped, tag = 'scoped memory for tpu_custom_call.1']
    #allocation6 [shape = 'u8[4096]{0}', space=vmem, size = 0x1000, scoped, tag = 'input window, operand 1, single buffered']
    #allocation7 [shape = 's32[1]{0}', space=sflag, size = 0x4, scoped, tag = 'scoped memory for tpu_custom_call.1']
    #allocation8 [shape = 'u8[24576]{0}', space=vmem, size = 0x6000, scoped, tag = 'input window, operand 3, single buffered']
    #allocation9 [shape = 'u8[131072]{0}', space=vmem, size = 0x20000, scoped, tag = 'input window, operand 4, single buffered']
    #allocation10 [shape = 's32[1]{0}', space=sflag, size = 0x4, scoped, tag = 'scoped memory for tpu_custom_call.1']
    #allocation11 [shape = 'u8[4096]{0}', space=vmem, size = 0x1000, scoped, tag = 'output window, operand 0, single buffered']
    %12 = vsyncpa [#allocation4], 0
    %13 = vsyncpa [#allocation7], 0
    %14 = vsyncpa [#allocation10], 0
    %15 = vsyncpa [#allocation5], 0
    // Predicated region
    $region2: #{tpu_custom_call.1} parent=1 // pred_check
      _
    $region3: #{tpu_custom_call.1} parent=1 // pred_check_branch
      %17 = sbr.rel (0) target = $region5
    $region4: #{tpu_custom_call.1} parent=1 // pred_region
      %s19 = ssub.s32 128, 128
      %20 = vsyncadd [#allocation4], %s19
      %s22 = sshll.u32 [#allocation3], 4
      %s23 = int_to_ptr.vmem [resolvable:$true] %s22
      %25 = dma.hbm_to_vmem [thread:$0]  %s0, 128, %s23, [#allocation4]
    $region5: #{tpu_custom_call.1} parent=1 // pred_fallthru
      _
    // Predicated region
    $region6: #{tpu_custom_call.1} parent=1 // pred_check
      _
    $region7: #{tpu_custom_call.1} parent=1 // pred_check_branch
      %27 = sbr.rel (0) target = $region9
    $region8: #{tpu_custom_call.1} parent=1 // pred_region
      %s29 = ssub.s32 128, 128
      %30 = vsyncadd [#allocation7], %s29
      %s32 = sshll.u32 [#allocation6], 4
      %s33 = int_to_ptr.vmem [resolvable:$true] %s32
      %35 = dma.hbm_to_vmem [thread:$0]  %s1, 128, %s33, [#allocation7]
    $region9: #{tpu_custom_call.1} parent=1 // pred_fallthru
      _
    // Predicated region
    $region10: #{tpu_custom_call.1} parent=1 // pred_check
      _
    $region11: #{tpu_custom_call.1} parent=1 // pred_check_branch
      %37 = sbr.rel (0) target = $region13
    $region12: #{tpu_custom_call.1} parent=1 // pred_region
      _
    $region13: #{tpu_custom_call.1} parent=1 // pred_fallthru
      _
    // Predicated region
    $region14: #{tpu_custom_call.1} parent=1 // pred_check
      _
    $region15: #{tpu_custom_call.1} parent=1 // pred_check_branch
      %39 = sbr.rel (0) target = $region17
    $region16: #{tpu_custom_call.1} parent=1 // pred_region
      %s41 = ssub.s32 768, 768
      %42 = vsyncadd [#allocation7], %s41
      %s43 = sshll.u32 [#allocation8], 4
      %s44 = int_to_ptr.vmem [resolvable:$true] %s43
      %49 = dma.hbm_to_vmem [thread:$0]  %s3, 768, %s44, [#allocation7], 384, 384, 24
    $region17: #{tpu_custom_call.1} parent=1 // pred_fallthru
      _
    // Predicated region
    $region18: #{tpu_custom_call.1} parent=1 // pred_check
      _
    $region19: #{tpu_custom_call.1} parent=1 // pred_check_branch
      %51 = sbr.rel (0) target = $region21
    $region20: #{tpu_custom_call.1} parent=1 // pred_region
      %s53 = ssub.s32 4096, 4096
      %54 = vsyncadd [#allocation10], %s53
      %s55 = sshll.u32 [#allocation9], 4
      %s56 = int_to_ptr.vmem [resolvable:$true] %s55
      %61 = dma.hbm_to_vmem [thread:$0]  %s4, 4096, %s56, [#allocation10], 128, 128, 8
    $region21: #{tpu_custom_call.1} parent=1 // pred_fallthru
      _
    // Predicated region
    $region22: #{tpu_custom_call.1} parent=1 // pred_check
      _
    $region23: #{tpu_custom_call.1} parent=1 // pred_check_branch
      %63 = sbr.rel (0) target = $region25
    $region24: #{tpu_custom_call.1} parent=1 // pred_region
      _
    $region25: #{tpu_custom_call.1} parent=1 // pred_fallthru
      _
    // Predicated region
    $region26: #{tpu_custom_call.1} parent=1 // pred_check
      _
    $region27: #{tpu_custom_call.1} parent=1 // pred_check_branch
      %65 = sbr.rel (0) target = $region29
    $region28: #{tpu_custom_call.1} parent=1 // pred_region
      _
    $region29: #{tpu_custom_call.1} parent=1 // pred_fallthru
      _
    // Predicated region
    $region30: #{tpu_custom_call.1} parent=1 // pred_check
      _
    $region31: #{tpu_custom_call.1} parent=1 // pred_check_branch
      %67 = sbr.rel (0) target = $region33
    $region32: #{tpu_custom_call.1} parent=1 // pred_region
      %68 = dma.done [#allocation4], 128
    $region33: #{tpu_custom_call.1} parent=1 // pred_fallthru
      _
    // Predicated region
    $region34: #{tpu_custom_call.1} parent=1 // pred_check
      _
    $region35: #{tpu_custom_call.1} parent=1 // pred_check_branch
      %70 = sbr.rel (0) target = $region37
    $region36: #{tpu_custom_call.1} parent=1 // pred_region
      %71 = dma.done [#allocation7], 128
    $region37: #{tpu_custom_call.1} parent=1 // pred_fallthru
      _
    // Predicated region
    $region38: #{tpu_custom_call.1} parent=1 // pred_check
      _
    $region39: #{tpu_custom_call.1} parent=1 // pred_check_branch
      %73 = sbr.rel (0) target = $region41
    $region40: #{tpu_custom_call.1} parent=1 // pred_region
      %74 = dma.done [#allocation7], 768
    $region41: #{tpu_custom_call.1} parent=1 // pred_fallthru
      _
    // Predicated region
    $region42: #{tpu_custom_call.1} parent=1 // pred_check
      _
    $region43: #{tpu_custom_call.1} parent=1 // pred_check_branch
      %76 = sbr.rel (0) target = $region45
    $region44: #{tpu_custom_call.1} parent=1 // pred_region
      %77 = dma.done [#allocation10], 4096
    $region45: #{tpu_custom_call.1} parent=1 // pred_fallthru
      _
    %p78 = scmp.eq.s32.totalorder 0, 0
    // Predicated region
    $region46: #{tpu_custom_call.1} parent=1 // pred_check
      %p79 = pneg %p78
    $region47: #{tpu_custom_call.1} parent=1 // pred_check_branch
      %81 = sbr.rel (%p79) target = $region49
    $region48: #{tpu_custom_call.1} parent=1 // pred_region
      %v82 = vld [vmem:[#allocation3] sm:$0xff]
      %vm83 = vcmask 523264
      %84 = vst.msk [vmem:[#allocation2] sm:$0xff] %vm83, %v82
    $region49: #{tpu_custom_call.1} parent=1 // pred_fallthru
      _
    %v85 = vld [vmem:[#allocation2] sm:$0xff]
    %v86 = vld [vmem:[#allocation6] sm:$0xff]
    %v87 = vld [vmem:[#allocation8] sm:$0xff]
    %v88 = vld [vmem:[#allocation8 + $0x8] sm:$0xff]
    %v89 = vld [vmem:[#allocation8 + $0x10] sm:$0xff]
    %v90 = vld [vmem:[#allocation8 + $0x18] sm:$0xff]
    %v91 = vld [vmem:[#allocation8 + $0x20] sm:$0xff]
    %v92 = vld [vmem:[#allocation8 + $0x28] sm:$0xff]
    %vm93 = vcmask 130048
    %v95 = vsel %vm93, %v86, 0
    %97 = vmatprep.subr.mxu0 0.0
    %98 = vmatpush1.msra.mxu0 0.0
    %99 = vmatprep.subr.mxu0 0.0
    %100 = vmatpush1.msra.mxu0 0.0
    %101 = vmatprep.subr.mxu0 0.0
    %102 = vmatpush1.msra.mxu0 0.0
    %103 = vmatprep.subr.mxu0 0.0
    %104 = vmatpush1.msra.mxu0 0.0
    %105 = vmatprep.subr.mxu0 0.0
    %106 = vmatpush1.msra.mxu0 0.0
    %107 = vmatprep.subr.mxu0 0.0
    %108 = vmatpush1.msra.mxu0 0.0
    %109 = vmatprep.subr.mxu0 0.0
    %110 = vmatpush1.msra.mxu0 0.0
    %111 = vmatprep.subr.mxu0 0.0
    %112 = vmatpush1.msra.mxu0 0.0
    %113 = vmatprep.subr.mxu0 0.0
    %114 = vmatpush1.msra.mxu0 0.0
    %115 = vmatprep.subr.mxu0 0.0
    %116 = vmatpush1.msra.mxu0 0.0
    %117 = vmatprep.subr.mxu0 0.0
    %118 = vmatpush1.msra.mxu0 0.0
    %119 = vmatprep.subr.mxu0 0.0
    %120 = vmatpush1.msra.mxu0 0.0
    %121 = vmatprep.subr.mxu0 0.0
    %122 = vmatpush1.msra.mxu0 0.0
    %123 = vmatprep.subr.mxu0 0.0
    %124 = vmatpush1.msra.mxu0 0.0
    %125 = vmatprep.subr.mxu0 %v91
    %126 = vmatpush1.msra.mxu0 %v90
    %127 = vmatprep.subr.mxu0 %v88
    %128 = vmatpush1.msra.mxu0 %v87
    %129 = vmatprep.subr.mxu0 0.0
    %130 = vmatpush2.msra.mxu0 0.0
    %131 = vmatprep.subr.mxu0 0.0
    %132 = vmatpush2.msra.mxu0 0.0
    %133 = vmatprep.subr.mxu0 0.0
    %134 = vmatpush2.msra.mxu0 0.0
    %135 = vmatprep.subr.mxu0 0.0
    %136 = vmatpush2.msra.mxu0 0.0
    %137 = vmatprep.subr.mxu0 0.0
    %138 = vmatpush2.msra.mxu0 0.0
    %139 = vmatprep.subr.mxu0 0.0
    %140 = vmatpush2.msra.mxu0 0.0
    %141 = vmatprep.subr.mxu0 0.0
    %142 = vmatpush2.msra.mxu0 0.0
    %143 = vmatprep.subr.mxu0 0.0
    %144 = vmatpush2.msra.mxu0 0.0
    %145 = vmatprep.subr.mxu0 0.0
    %146 = vmatpush2.msra.mxu0 0.0
    %147 = vmatprep.subr.mxu0 0.0
    %148 = vmatpush2.msra.mxu0 0.0
    %149 = vmatprep.subr.mxu0 0.0
    %150 = vmatpush2.msra.mxu0 0.0
    %151 = vmatprep.subr.mxu0 0.0
    %152 = vmatpush2.msra.mxu0 0.0
    %153 = vmatprep.subr.mxu0 0.0
    %154 = vmatpush2.msra.mxu0 0.0
    %155 = vmatprep.subr.mxu0 0.0
    %156 = vmatpush2.msra.mxu0 0.0
    %157 = vmatprep.subr.mxu0 0.0
    %158 = vmatpush2.msra.mxu0 0.0
    %159 = vmatprep.subr.mxu0 0.0
    %160 = vmatpush2.msra.mxu0 0.0
    %161 = vmatprep.mubr.f32.mxu0 0.0
    %162 = vmatmul.mubr.f32.gmra.mxu0 %v95
    %v163 = vpop.f32.mrf.mxu0
    %v164 = vadd.f32 0.0, %v163
    %v165 = vpop.f32.mrf.mxu0
    %v166 = vadd.f32 0.0, %v165
    %167 = vdwg.mxu0
    %168 = vmatprep.subr.mxu0 0.0
    %169 = vmatpush1.msra.mxu0 0.0
    %170 = vmatprep.subr.mxu0 0.0
    %171 = vmatpush1.msra.mxu0 0.0
    %172 = vmatprep.subr.mxu0 0.0
    %173 = vmatpush1.msra.mxu0 0.0
    %174 = vmatprep.subr.mxu0 0.0
    %175 = vmatpush1.msra.mxu0 0.0
    %176 = vmatprep.subr.mxu0 0.0
    %177 = vmatpush1.msra.mxu0 0.0
    %178 = vmatprep.subr.mxu0 0.0
    %179 = vmatpush1.msra.mxu0 0.0
    %180 = vmatprep.subr.mxu0 0.0
    %181 = vmatpush1.msra.mxu0 0.0
    %182 = vmatprep.subr.mxu0 0.0
    %183 = vmatpush1.msra.mxu0 0.0
    %184 = vmatprep.subr.mxu0 0.0
    %185 = vmatpush1.msra.mxu0 0.0
    %186 = vmatprep.subr.mxu0 0.0
    %187 = vmatpush1.msra.mxu0 0.0
    %188 = vmatprep.subr.mxu0 0.0
    %189 = vmatpush1.msra.mxu0 0.0
    %190 = vmatprep.subr.mxu0 0.0
    %191 = vmatpush1.msra.mxu0 0.0
    %192 = vmatprep.subr.mxu0 0.0
    %193 = vmatpush1.msra.mxu0 0.0
    %194 = vmatprep.subr.mxu0 0.0
    %195 = vmatpush1.msra.mxu0 0.0
    %196 = vmatprep.subr.mxu0 0.0
    %197 = vmatpush1.msra.mxu0 %v92
    %198 = vmatprep.subr.mxu0 0.0
    %199 = vmatpush1.msra.mxu0 %v89
    %200 = vmatprep.subr.mxu0 0.0
    %201 = vmatpush2.msra.mxu0 0.0
    %202 = vmatprep.subr.mxu0 0.0
    %203 = vmatpush2.msra.mxu0 0.0
    %204 = vmatprep.subr.mxu0 0.0
    %205 = vmatpush2.msra.mxu0 0.0
    %206 = vmatprep.subr.mxu0 0.0
    %207 = vmatpush2.msra.mxu0 0.0
    %208 = vmatprep.subr.mxu0 0.0
    %209 = vmatpush2.msra.mxu0 0.0
    %210 = vmatprep.subr.mxu0 0.0
    %211 = vmatpush2.msra.mxu0 0.0
    %212 = vmatprep.subr.mxu0 0.0
    %213 = vmatpush2.msra.mxu0 0.0
    %214 = vmatprep.subr.mxu0 0.0
    %215 = vmatpush2.msra.mxu0 0.0
    %216 = vmatprep.subr.mxu0 0.0
    %217 = vmatpush2.msra.mxu0 0.0
    %218 = vmatprep.subr.mxu0 0.0
    %219 = vmatpush2.msra.mxu0 0.0
    %220 = vmatprep.subr.mxu0 0.0
    %221 = vmatpush2.msra.mxu0 0.0
    %222 = vmatprep.subr.mxu0 0.0
    %223 = vmatpush2.msra.mxu0 0.0
    %224 = vmatprep.subr.mxu0 0.0
    %225 = vmatpush2.msra.mxu0 0.0
    %226 = vmatprep.subr.mxu0 0.0
    %227 = vmatpush2.msra.mxu0 0.0
    %228 = vmatprep.subr.mxu0 0.0
    %229 = vmatpush2.msra.mxu0 0.0
    %230 = vmatprep.subr.mxu0 0.0
    %231 = vmatpush2.msra.mxu0 0.0
    %232 = vmatprep.mubr.f32.mxu0 0.0
    %233 = vmatmul.mubr.f32.gmra.mxu0 %v95
    %v234 = vpop.f32.mrf.mxu0
    %v235 = vadd.f32 0.0, %v234
    %v236 = vpop.f32.mrf.mxu0
    %237 = vdwg.mxu0
    %v238 = vld [vmem:[%s2] sm:$0xff]
    %v239 = vld [vmem:[%s2 + $0x8] sm:$0xff]
    %v240 = vld [vmem:[%s2 + $0x10] sm:$0xff]
    %v241 = vld [vmem:[%s2 + $0x18] sm:$0xff]
    %v242 = vld [vmem:[%s2 + $0x20] sm:$0xff]
    %v243 = vld [vmem:[%s2 + $0x28] sm:$0xff]
    %v244 = vld [vmem:[%s2 + $0x30] sm:$0xff]
    %v245 = vld [vmem:[%s2 + $0x38] sm:$0xff]
    %v246 = vld [vmem:[%s2 + $0x40] sm:$0xff]
    %v247 = vld [vmem:[%s2 + $0x48] sm:$0xff]
    %v248 = vld [vmem:[%s2 + $0x50] sm:$0xff]
    %v249 = vld [vmem:[%s2 + $0x58] sm:$0xff]
    %v250 = vld [vmem:[%s2 + $0x60] sm:$0xff]
    %v251 = vld [vmem:[%s2 + $0x68] sm:$0xff]
    %v252 = vld [vmem:[%s2 + $0x70] sm:$0xff]
    %v253 = vld [vmem:[%s2 + $0x78] sm:$0xff]
    %vm254 = vcmask 523264
    %v256 = vsel %vm254, %v85, 0
    %258 = vmatprep.subr.mxu0 0.0
    %259 = vmatpush1.msra.mxu0 0.0
    %260 = vmatprep.subr.mxu0 0.0
    %261 = vmatpush1.msra.mxu0 0.0
    %262 = vmatprep.subr.mxu0 0.0
    %263 = vmatpush1.msra.mxu0 0.0
    %264 = vmatprep.subr.mxu0 0.0
    %265 = vmatpush1.msra.mxu0 0.0
    %266 = vmatprep.subr.mxu0 0.0
    %267 = vmatpush1.msra.mxu0 0.0
    %268 = vmatprep.subr.mxu0 0.0
    %269 = vmatpush1.msra.mxu0 0.0
    %270 = vmatprep.subr.mxu0 0.0
    %271 = vmatpush1.msra.mxu0 0.0
    %272 = vmatprep.subr.mxu0 0.0
    %273 = vmatpush1.msra.mxu0 0.0
    %274 = vmatprep.subr.mxu0 %v253
    %275 = vmatpush1.msra.mxu0 %v252
    %276 = vmatprep.subr.mxu0 %v251
    %277 = vmatpush1.msra.mxu0 %v250
    %278 = vmatprep.subr.mxu0 %v249
    %279 = vmatpush1.msra.mxu0 %v248
    %280 = vmatprep.subr.mxu0 %v247
    %281 = vmatpush1.msra.mxu0 %v246
    %282 = vmatprep.subr.mxu0 %v245
    %283 = vmatpush1.msra.mxu0 %v244
    %284 = vmatprep.subr.mxu0 %v243
    %285 = vmatpush1.msra.mxu0 %v242
    %286 = vmatprep.subr.mxu0 %v241
    %287 = vmatpush1.msra.mxu0 %v240
    %288 = vmatprep.subr.mxu0 %v239
    %289 = vmatpush1.msra.mxu0 %v238
    %290 = vmatprep.subr.mxu0 0.0
    %291 = vmatpush2.msra.mxu0 0.0
    %292 = vmatprep.subr.mxu0 0.0
    %293 = vmatpush2.msra.mxu0 0.0
    %294 = vmatprep.subr.mxu0 0.0
    %295 = vmatpush2.msra.mxu0 0.0
    %296 = vmatprep.subr.mxu0 0.0
    %297 = vmatpush2.msra.mxu0 0.0
    %298 = vmatprep.subr.mxu0 0.0
    %299 = vmatpush2.msra.mxu0 0.0
    %300 = vmatprep.subr.mxu0 0.0
    %301 = vmatpush2.msra.mxu0 0.0
    %302 = vmatprep.subr.mxu0 0.0
    %303 = vmatpush2.msra.mxu0 0.0
    %304 = vmatprep.subr.mxu0 0.0
    %305 = vmatpush2.msra.mxu0 0.0
    %306 = vmatprep.subr.mxu0 0.0
    %307 = vmatpush2.msra.mxu0 0.0
    %308 = vmatprep.subr.mxu0 0.0
    %309 = vmatpush2.msra.mxu0 0.0
    %310 = vmatprep.subr.mxu0 0.0
    %311 = vmatpush2.msra.mxu0 0.0
    %312 = vmatprep.subr.mxu0 0.0
    %313 = vmatpush2.msra.mxu0 0.0
    %314 = vmatprep.subr.mxu0 0.0
    %315 = vmatpush2.msra.mxu0 0.0
    %316 = vmatprep.subr.mxu0 0.0
    %317 = vmatpush2.msra.mxu0 0.0
    %318 = vmatprep.subr.mxu0 0.0
    %319 = vmatpush2.msra.mxu0 0.0
    %320 = vmatprep.subr.mxu0 0.0
    %321 = vmatpush2.msra.mxu0 0.0
    %322 = vmatprep.mubr.f32.mxu0 0.0
    %323 = vmatmul.mubr.f32.gmra.mxu0 %v256
    %v324 = vpop.f32.mrf.mxu0
    %v325 = vadd.f32 0.0, %v324
    %v326 = vpop.f32.mrf.mxu0
    %v327 = vadd.f32 0.0, %v326
    %328 = vdwg.mxu0
    %v329 = vadd.f32 %v164, %v325
    %v330 = vadd.f32 %v166, %v327
    %v331 = vmax.f32 %v329, 0.0
    %v332 = vmax.f32 %v330, 0.0
    %v333 = vld [vmem:[#allocation9] sm:$0xff]
    %v334 = vld [vmem:[#allocation9 + $0x8] sm:$0xff]
    %v335 = vld [vmem:[#allocation9 + $0x10] sm:$0xff]
    %v336 = vld [vmem:[#allocation9 + $0x18] sm:$0xff]
    %v337 = vld [vmem:[#allocation9 + $0x20] sm:$0xff]
    %v338 = vld [vmem:[#allocation9 + $0x28] sm:$0xff]
    %v339 = vld [vmem:[#allocation9 + $0x30] sm:$0xff]
    %v340 = vld [vmem:[#allocation9 + $0x38] sm:$0xff]
    %v341 = vld [vmem:[#allocation9 + $0x40] sm:$0xff]
    %v342 = vld [vmem:[#allocation9 + $0x48] sm:$0xff]
    %v343 = vld [vmem:[#allocation9 + $0x50] sm:$0xff]
    %v344 = vld [vmem:[#allocation9 + $0x58] sm:$0xff]
    %v345 = vld [vmem:[#allocation9 + $0x60] sm:$0xff]
    %v346 = vld [vmem:[#allocation9 + $0x68] sm:$0xff]
    %v347 = vld [vmem:[#allocation9 + $0x70] sm:$0xff]
    %v348 = vld [vmem:[#allocation9 + $0x78] sm:$0xff]
    %v349 = vld [vmem:[#allocation9 + $0x80] sm:$0xff]
    %v350 = vld [vmem:[#allocation9 + $0x88] sm:$0xff]
    %v351 = vld [vmem:[#allocation9 + $0x90] sm:$0xff]
    %v352 = vld [vmem:[#allocation9 + $0x98] sm:$0xff]
    %v353 = vld [vmem:[#allocation9 + $0xa0] sm:$0xff]
    %v354 = vld [vmem:[#allocation9 + $0xa8] sm:$0xff]
    %v355 = vld [vmem:[#allocation9 + $0xb0] sm:$0xff]
    %v356 = vld [vmem:[#allocation9 + $0xb8] sm:$0xff]
    %v357 = vld [vmem:[#allocation9 + $0xc0] sm:$0xff]
    %v358 = vld [vmem:[#allocation9 + $0xc8] sm:$0xff]
    %v359 = vld [vmem:[#allocation9 + $0xd0] sm:$0xff]
    %v360 = vld [vmem:[#allocation9 + $0xd8] sm:$0xff]
    %v361 = vld [vmem:[#allocation9 + $0xe0] sm:$0xff]
    %v362 = vld [vmem:[#allocation9 + $0xe8] sm:$0xff]
    %v363 = vld [vmem:[#allocation9 + $0xf0] sm:$0xff]
    %v364 = vld [vmem:[#allocation9 + $0xf8] sm:$0xff]
    %365 = vmatprep.subr.mxu0 0.0
    %366 = vmatpush1.msra.mxu0 %v348
    %367 = vmatprep.subr.mxu0 0.0
    %368 = vmatpush1.msra.mxu0 %v347
    %369 = vmatprep.subr.mxu0 0.0
    %370 = vmatpush1.msra.mxu0 %v346
    %371 = vmatprep.subr.mxu0 0.0
    %372 = vmatpush1.msra.mxu0 %v345
    %373 = vmatprep.subr.mxu0 0.0
    %374 = vmatpush1.msra.mxu0 %v344
    %375 = vmatprep.subr.mxu0 0.0
    %376 = vmatpush1.msra.mxu0 %v343
    %377 = vmatprep.subr.mxu0 0.0
    %378 = vmatpush1.msra.mxu0 %v342
    %379 = vmatprep.subr.mxu0 0.0
    %380 = vmatpush1.msra.mxu0 %v341
    %381 = vmatprep.subr.mxu0 0.0
    %382 = vmatpush1.msra.mxu0 %v340
    %383 = vmatprep.subr.mxu0 0.0
    %384 = vmatpush1.msra.mxu0 %v339
    %385 = vmatprep.subr.mxu0 0.0
    %386 = vmatpush1.msra.mxu0 %v338
    %387 = vmatprep.subr.mxu0 0.0
    %388 = vmatpush1.msra.mxu0 %v337
    %389 = vmatprep.subr.mxu0 0.0
    %390 = vmatpush1.msra.mxu0 %v336
    %391 = vmatprep.subr.mxu0 0.0
    %392 = vmatpush1.msra.mxu0 %v335
    %393 = vmatprep.subr.mxu0 0.0
    %394 = vmatpush1.msra.mxu0 %v334
    %395 = vmatprep.subr.mxu0 0.0
    %396 = vmatpush1.msra.mxu0 %v333
    %397 = vmatprep.subr.mxu0 0.0
    %398 = vmatpush2.msra.mxu0 %v364
    %399 = vmatprep.subr.mxu0 0.0
    %400 = vmatpush2.msra.mxu0 %v363
    %401 = vmatprep.subr.mxu0 0.0
    %402 = vmatpush2.msra.mxu0 %v362
    %403 = vmatprep.subr.mxu0 0.0
    %404 = vmatpush2.msra.mxu0 %v361
    %405 = vmatprep.subr.mxu0 0.0
    %406 = vmatpush2.msra.mxu0 %v360
    %407 = vmatprep.subr.mxu0 0.0
    %408 = vmatpush2.msra.mxu0 %v359
    %409 = vmatprep.subr.mxu0 0.0
    %410 = vmatpush2.msra.mxu0 %v358
    %411 = vmatprep.subr.mxu0 0.0
    %412 = vmatpush2.msra.mxu0 %v357
    %413 = vmatprep.subr.mxu0 0.0
    %414 = vmatpush2.msra.mxu0 %v356
    %415 = vmatprep.subr.mxu0 0.0
    %416 = vmatpush2.msra.mxu0 %v355
    %417 = vmatprep.subr.mxu0 0.0
    %418 = vmatpush2.msra.mxu0 %v354
    %419 = vmatprep.subr.mxu0 0.0
    %420 = vmatpush2.msra.mxu0 %v353
    %421 = vmatprep.subr.mxu0 0.0
    %422 = vmatpush2.msra.mxu0 %v352
    %423 = vmatprep.subr.mxu0 0.0
    %424 = vmatpush2.msra.mxu0 %v351
    %425 = vmatprep.subr.mxu0 0.0
    %426 = vmatpush2.msra.mxu0 %v350
    %427 = vmatprep.subr.mxu0 0.0
    %428 = vmatpush2.msra.mxu0 %v349
    %429 = vmatprep.mubr.f32.mxu0 %v332
    %430 = vmatmul.mubr.f32.gmra.mxu0 %v331
    %v431 = vpop.f32.mrf.mxu0
    %v432 = vadd.f32 0.0, %v431
    %v433 = vpop.f32.mrf.mxu0
    %434 = vdwg.mxu0
    %v435 = vxor.u32 %v432, 2147483648
    %v436 = vmul.f32 %v435, 1.442695
    %v437 = vpow.pop %v436
    %v438 = vadd.f32 %v437, 1.0
    %v439 = vrcp.pop %v438
    %v440 = vmul.f32 1.0, %v439
    %442 = vrot.lane.b32.xlu0 %v440, 64
    %v443 = vpop.permute.xlu0 %442
    %v445 = vmul.f32 %v85, %v443
    %v446 = vld [vmem:[%s5] sm:$0xff]
    %v447 = vld [vmem:[%s5 + $0x8] sm:$0xff]
    %v448 = vld [vmem:[%s5 + $0x10] sm:$0xff]
    %v449 = vld [vmem:[%s5 + $0x18] sm:$0xff]
    %v450 = vld [vmem:[%s5 + $0x20] sm:$0xff]
    %v451 = vld [vmem:[%s5 + $0x28] sm:$0xff]
    %v452 = vld [vmem:[%s5 + $0x30] sm:$0xff]
    %v453 = vld [vmem:[%s5 + $0x38] sm:$0xff]
    %v455 = vsel %vm254, %v445, 0
    %457 = vmatprep.subr.mxu0 0.0
    %458 = vmatpush1.msra.mxu0 0.0
    %459 = vmatprep.subr.mxu0 0.0
    %460 = vmatpush1.msra.mxu0 0.0
    %461 = vmatprep.subr.mxu0 0.0
    %462 = vmatpush1.msra.mxu0 0.0
    %463 = vmatprep.subr.mxu0 0.0
    %464 = vmatpush1.msra.mxu0 0.0
    %465 = vmatprep.subr.mxu0 0.0
    %466 = vmatpush1.msra.mxu0 0.0
    %467 = vmatprep.subr.mxu0 0.0
    %468 = vmatpush1.msra.mxu0 0.0
    %469 = vmatprep.subr.mxu0 0.0
    %470 = vmatpush1.msra.mxu0 0.0
    %471 = vmatprep.subr.mxu0 0.0
    %472 = vmatpush1.msra.mxu0 0.0
    %473 = vmatprep.subr.mxu0 0.0
    %474 = vmatpush1.msra.mxu0 %v453
    %475 = vmatprep.subr.mxu0 0.0
    %476 = vmatpush1.msra.mxu0 %v452
    %477 = vmatprep.subr.mxu0 0.0
    %478 = vmatpush1.msra.mxu0 %v451
    %479 = vmatprep.subr.mxu0 0.0
    %480 = vmatpush1.msra.mxu0 %v450
    %481 = vmatprep.subr.mxu0 0.0
    %482 = vmatpush1.msra.mxu0 %v449
    %483 = vmatprep.subr.mxu0 0.0
    %484 = vmatpush1.msra.mxu0 %v448
    %485 = vmatprep.subr.mxu0 0.0
    %486 = vmatpush1.msra.mxu0 %v447
    %487 = vmatprep.subr.mxu0 0.0
    %488 = vmatpush1.msra.mxu0 %v446
    %489 = vmatprep.subr.mxu0 0.0
    %490 = vmatpush2.msra.mxu0 0.0
    %491 = vmatprep.subr.mxu0 0.0
    %492 = vmatpush2.msra.mxu0 0.0
    %493 = vmatprep.subr.mxu0 0.0
    %494 = vmatpush2.msra.mxu0 0.0
    %495 = vmatprep.subr.mxu0 0.0
    %496 = vmatpush2.msra.mxu0 0.0
    %497 = vmatprep.subr.mxu0 0.0
    %498 = vmatpush2.msra.mxu0 0.0
    %499 = vmatprep.subr.mxu0 0.0
    %500 = vmatpush2.msra.mxu0 0.0
    %501 = vmatprep.subr.mxu0 0.0
    %502 = vmatpush2.msra.mxu0 0.0
    %503 = vmatprep.subr.mxu0 0.0
    %504 = vmatpush2.msra.mxu0 0.0
    %505 = vmatprep.subr.mxu0 0.0
    %506 = vmatpush2.msra.mxu0 0.0
    %507 = vmatprep.subr.mxu0 0.0
    %508 = vmatpush2.msra.mxu0 0.0
    %509 = vmatprep.subr.mxu0 0.0
    %510 = vmatpush2.msra.mxu0 0.0
    %511 = vmatprep.subr.mxu0 0.0
    %512 = vmatpush2.msra.mxu0 0.0
    %513 = vmatprep.subr.mxu0 0.0
    %514 = vmatpush2.msra.mxu0 0.0
    %515 = vmatprep.subr.mxu0 0.0
    %516 = vmatpush2.msra.mxu0 0.0
    %517 = vmatprep.subr.mxu0 0.0
    %518 = vmatpush2.msra.mxu0 0.0
    %519 = vmatprep.subr.mxu0 0.0
    %520 = vmatpush2.msra.mxu0 0.0
    %521 = vmatprep.mubr.f32.mxu0 0.0
    %522 = vmatmul.mubr.f32.gmra.mxu0 %v455
    %v523 = vpop.f32.mrf.mxu0
    %v524 = vadd.f32 0.0, %v523
    %v525 = vpop.f32.mrf.mxu0
    %526 = vdwg.mxu0
    %v527 = vadd.f32 %v235, %v524
    %v528 = vmax.f32 %v527, 0.0
    %v529 = vld [vmem:[%s6] sm:$0xff]
    %v530 = vld [vmem:[%s6 + $0x8] sm:$0xff]
    %v531 = vld [vmem:[%s6 + $0x10] sm:$0xff]
    %v532 = vld [vmem:[%s6 + $0x18] sm:$0xff]
    %v533 = vld [vmem:[%s6 + $0x20] sm:$0xff]
    %v534 = vld [vmem:[%s6 + $0x28] sm:$0xff]
    %v535 = vld [vmem:[%s6 + $0x30] sm:$0xff]
    %v536 = vld [vmem:[%s6 + $0x38] sm:$0xff]
    %v537 = vld [vmem:[%s6 + $0x40] sm:$0xff]
    %v538 = vld [vmem:[%s6 + $0x48] sm:$0xff]
    %v539 = vld [vmem:[%s6 + $0x50] sm:$0xff]
    %v540 = vld [vmem:[%s6 + $0x58] sm:$0xff]
    %v541 = vld [vmem:[%s6 + $0x60] sm:$0xff]
    %v542 = vld [vmem:[%s6 + $0x68] sm:$0xff]
    %v543 = vld [vmem:[%s6 + $0x70] sm:$0xff]
    %v544 = vld [vmem:[%s6 + $0x78] sm:$0xff]
    %545 = vmatprep.subr.mxu0 0.0
    %546 = vmatpush1.msra.mxu0 %v544
    %547 = vmatprep.subr.mxu0 0.0
    %548 = vmatpush1.msra.mxu0 %v543
    %549 = vmatprep.subr.mxu0 0.0
    %550 = vmatpush1.msra.mxu0 %v542
    %551 = vmatprep.subr.mxu0 0.0
    %552 = vmatpush1.msra.mxu0 %v541
    %553 = vmatprep.subr.mxu0 0.0
    %554 = vmatpush1.msra.mxu0 %v540
    %555 = vmatprep.subr.mxu0 0.0
    %556 = vmatpush1.msra.mxu0 %v539
    %557 = vmatprep.subr.mxu0 0.0
    %558 = vmatpush1.msra.mxu0 %v538
    %559 = vmatprep.subr.mxu0 0.0
    %560 = vmatpush1.msra.mxu0 %v537
    %561 = vmatprep.subr.mxu0 0.0
    %562 = vmatpush1.msra.mxu0 %v536
    %563 = vmatprep.subr.mxu0 0.0
    %564 = vmatpush1.msra.mxu0 %v535
    %565 = vmatprep.subr.mxu0 0.0
    %566 = vmatpush1.msra.mxu0 %v534
    %567 = vmatprep.subr.mxu0 0.0
    %568 = vmatpush1.msra.mxu0 %v533
    %569 = vmatprep.subr.mxu0 0.0
    %570 = vmatpush1.msra.mxu0 %v532
    %571 = vmatprep.subr.mxu0 0.0
    %572 = vmatpush1.msra.mxu0 %v531
    %573 = vmatprep.subr.mxu0 0.0
    %574 = vmatpush1.msra.mxu0 %v530
    %575 = vmatprep.subr.mxu0 0.0
    %576 = vmatpush1.msra.mxu0 %v529
    %577 = vmatprep.subr.mxu0 0.0
    %578 = vmatpush2.msra.mxu0 0.0
    %579 = vmatprep.subr.mxu0 0.0
    %580 = vmatpush2.msra.mxu0 0.0
    %581 = vmatprep.subr.mxu0 0.0
    %582 = vmatpush2.msra.mxu0 0.0
    %583 = vmatprep.subr.mxu0 0.0
    %584 = vmatpush2.msra.mxu0 0.0
    %585 = vmatprep.subr.mxu0 0.0
    %586 = vmatpush2.msra.mxu0 0.0
    %587 = vmatprep.subr.mxu0 0.0
    %588 = vmatpush2.msra.mxu0 0.0
    %589 = vmatprep.subr.mxu0 0.0
    %590 = vmatpush2.msra.mxu0 0.0
    %591 = vmatprep.subr.mxu0 0.0
    %592 = vmatpush2.msra.mxu0 0.0
    %593 = vmatprep.subr.mxu0 0.0
    %594 = vmatpush2.msra.mxu0 0.0
    %595 = vmatprep.subr.mxu0 0.0
    %596 = vmatpush2.msra.mxu0 0.0
    %597 = vmatprep.subr.mxu0 0.0
    %598 = vmatpush2.msra.mxu0 0.0
    %599 = vmatprep.subr.mxu0 0.0
    %600 = vmatpush2.msra.mxu0 0.0
    %601 = vmatprep.subr.mxu0 0.0
    %602 = vmatpush2.msra.mxu0 0.0
    %603 = vmatprep.subr.mxu0 0.0
    %604 = vmatpush2.msra.mxu0 0.0
    %605 = vmatprep.subr.mxu0 0.0
    %606 = vmatpush2.msra.mxu0 0.0
    %607 = vmatprep.subr.mxu0 0.0
    %608 = vmatpush2.msra.mxu0 0.0
    %609 = vmatprep.mubr.f32.mxu0 0.0
    %610 = vmatmul.mubr.f32.gmra.mxu0 %v528
    %v611 = vpop.f32.mrf.mxu0
    %v612 = vadd.f32 0.0, %v611
    %v613 = vpop.f32.mrf.mxu0
    %614 = vdwg.mxu0
    %v615 = vlaneseq
    %v616 = vand.u32 %v615, 127
    %vm617 = vcmp.ge.s32.totalorder %v616, 32
    %v618 = vand.u32 2147483647, %v612
    %v619 = vsel %vm617, %v618, %v612
    %v620 = vsub.f32 1.0, %v440
    %v621 = vmul.f32 %v620, %v619
    %v622 = vmul.f32 %v440, %v85
    %v623 = vadd.f32 %v621, %v622
    %624 = vset.pattern.permute.xlu0 9
    %625 = vperm.xlu0 %624, %v86
    %v626 = vpop.permute.xlu0 %625
    %v628 = vmul.f32 %v626, %v623
    %v629 = vsub.f32 1.0, %v86
    %631 = vset.pattern.permute.xlu0 9
    %632 = vperm.xlu0 %631, %v629
    %v633 = vpop.permute.xlu0 %632
    %v635 = vmul.f32 %v633, %v85
    %v636 = vadd.f32 %v628, %v635
    %637 = vst.msk [vmem:[#allocation2] sm:$0xff] %vm254, %v636
    %638 = vst.msk [vmem:[#allocation11] sm:$0xff] %vm254, %v636
    // Predicated region
    $region50: #{tpu_custom_call.1} parent=1 // pred_check
      _
    $region51: #{tpu_custom_call.1} parent=1 // pred_check_branch
      %640 = sbr.rel (0) target = $region53
    $region52: #{tpu_custom_call.1} parent=1 // pred_region
      %s642 = ssub.s32 128, 128
      %643 = vsyncadd [#allocation5], %s642
      %s645 = sshll.u32 [#allocation11], 4
      %s646 = int_to_ptr.vmem [resolvable:$true] %s645
      %648 = dma.vmem_to_hbm [thread:$0]  %s646, 128, %s7, [#allocation5]
    $region53: #{tpu_custom_call.1} parent=1 // pred_fallthru
      _
    // Predicated region
    $region54: #{tpu_custom_call.1} parent=1 // pred_check
      _
    $region55: #{tpu_custom_call.1} parent=1 // pred_check_branch
      %650 = sbr.rel (0) target = $region57
    $region56: #{tpu_custom_call.1} parent=1 // pred_region
      %651 = dma.done [#allocation5], 128
    $region57: #{tpu_custom_call.1} parent=1 // pred_fallthru
      _
    %652 = vsyncpa [#allocation4], 1
    %653 = vsyncpa [#allocation7], 1
    %654 = vsyncpa [#allocation10], 1
    %655 = vsyncpa [#allocation5], 1

</llo_original>
